<compile_context>
chip_gen: v5e
topology: v5e:2x2
jax: 0.10.0
libtpu: 0.0.40
codegen_flags: <defaults>
</compile_context>

<pallas_src>
import functools

import jax
import jax.numpy as jnp
from jax.experimental import pallas as pl
from jax.experimental.pallas import tpu as pltpu


def _round_down(x: int, m: int) -> int:
    return max(m, (x // m) * m)


def _apply_act(out, act):
    """Activation applied to (residual + transformed), matching the module."""
    if act is None or act == "none":
        return out
    if act == "tanh":
        return jnp.tanh(out)
    if act == "relu":
        return jnp.maximum(out, 0.0)
    if act == "sigmoid":
        return jax.nn.sigmoid(out)
    if callable(act):          # any jnp-traceable elementwise callable
        return act(out)
    raise ValueError(f"unsupported act: {act!r}")


# ---------------------------------------------------------------------------
# Kernels
# ---------------------------------------------------------------------------
def _gcn_kernel_resident(x_ref, w_ref, b_ref, o_ref, *, act, mxu_dtype):
    """out = act_or_id(x + x @ W' + b') with the full (F, F) W' resident in VMEM."""
    x = x_ref[...]                                                  # (tm, F)
    h = jnp.dot(x.astype(mxu_dtype), w_ref[...],
                preferred_element_type=jnp.float32)                 # (tm, F) f32 acc
    out = x.astype(jnp.float32) + h + b_ref[...]                    # residual + bias in f32
    o_ref[...] = _apply_act(out, act).astype(o_ref.dtype)


def _gcn_kernel_ntiled(xk_ref, xr_ref, w_ref, b_ref, o_ref, *, act, mxu_dtype):
    """Large-F path: one (F, tn) column panel of W' per step, no accumulator."""
    h = jnp.dot(xk_ref[...].astype(mxu_dtype), w_ref[...],
                preferred_element_type=jnp.float32)                 # (tm, tn)
    out = xr_ref[...].astype(jnp.float32) + h + b_ref[...]
    o_ref[...] = _apply_act(out, act).astype(o_ref.dtype)


# ---------------------------------------------------------------------------
# Wrapper
# ---------------------------------------------------------------------------
def _vmem_capacity_bytes() -> int:
    try:
        return int(pltpu.get_tpu_info().vmem_capacity_bytes)
    except Exception:
        return 64 * 1024 * 1024      # conservative (v7x-sized) fallback


def graph_convolution_layer(x, w, b, adj, *, act="none", mxu_dtype=None, n_tile=None):
    """x: (B, S, F); w, adj: (F, F); b: (F,). Returns act_or_id(x + (x@w+b)@adj)."""
    B, S, F = x.shape
    M = B * S
    x_bytes = jnp.dtype(x.dtype).itemsize

    # MXU dtype: f32 in the HBM-bound regime (free accuracy), bf16 only for
    # large F where the matmul can become compute-bound.
    if mxu_dtype is None:
        mxu_dtype = jnp.float32 if F <= 1024 else jnp.bfloat16
    mxu_np = jnp.dtype(mxu_dtype)
    w_bytes = mxu_np.itemsize
    cast_bytes = w_bytes if mxu_np != jnp.dtype(x.dtype) else 0

    # ---- exact algebraic fold (tiny FxF work, done once outside the kernel) ----
    w_fold = jnp.dot(w.astype(jnp.float32), adj.astype(jnp.float32),
                     preferred_element_type=jnp.float32).astype(mxu_dtype)   # (F, F)
    b_fold = jnp.dot(b.astype(jnp.float32).reshape(1, F), adj.astype(jnp.float32),
                     preferred_element_type=jnp.float32)                     # (1, F) f32

    x2d = x.reshape(M, F)        # free reshape; no jnp.pad anywhere

    # ---- generation-aware VMEM budget ----
    vmem_cap = _vmem_capacity_bytes()
    budget = int(vmem_cap * 0.8)

    # Row tile: >= 4 grid steps when M allows (2 per v7x TensorCore), cap 2048.
    if M >= 32:
        tm = min(2048, _round_down(M // 4, 8))
    else:
        tm = 8

    # Single-buffer the constant-index W' block only when its footprint matters.
    single_buf_w = (F * F * w_bytes) >= (8 << 20)

    def resident_need(tm_):
        io = 2 * tm_ * F * x_bytes * 2                         # dbl-buffered x + out tiles
        wt = (1 if single_buf_w else 2) * (F * F * w_bytes) + 2 * F * 4
        tmp = tm_ * F * (8 + cast_bytes)                       # f32 h/out + cast copy
        return io + wt + tmp + (2 << 20)                       # Mosaic scratch margin

    def ntiled_need(tm_, tn_):
        xk = 2 * tm_ * F * x_bytes
        xr = 2 * tm_ * tn_ * x_bytes
        ob = 2 * tm_ * tn_ * x_bytes
        wt = 2 * (F * tn_ * w_bytes + tn_ * 4)
        tmp = tm_ * tn_ * 8 + tm_ * F * cast_bytes
        return xk + xr + ob + wt + tmp + (2 << 20)

    use_ntiled = n_tile is not None
    if not use_ntiled:
        while resident_need(tm) > budget and tm > 8:
            tm = _round_down(tm // 2, 8)
        use_ntiled = resident_need(tm) > budget   # resident FxF W' cannot fit

    kernel_kwargs = dict(act=act, mxu_dtype=mxu_dtype)

    if not use_ntiled:
        # -------------------- resident-W' path (common case) --------------------
        need = resident_need(tm)
        vmem_limit = int(min(vmem_cap, max(32 << 20, need + (8 << 20))))
        if single_buf_w:
            w_spec = pl.BlockSpec((F, F), lambda i: (0, 0), pipeline_mode=pl.Buffered(1))
        else:
            w_spec = pl.BlockSpec((F, F), lambda i: (0, 0))
        out2d = pl.pallas_call(
            functools.partial(_gcn_kernel_resident, **kernel_kwargs),
            out_shape=jax.ShapeDtypeStruct((M, F), x.dtype),
            grid_spec=pltpu.PrefetchScalarGridSpec(
                num_scalar_prefetch=0,
                grid=(pl.cdiv(M, tm),),
                in_specs=[
                    pl.BlockSpec((tm, F), lambda i: (i, 0)),   # x row tile (pipelined)
                    w_spec,                                    # folded W' (resident)
                    pl.BlockSpec((1, F), lambda i: (0, 0)),    # folded b' (resident)
                ],
                out_specs=pl.BlockSpec((tm, F), lambda i: (i, 0)),
            ),
            compiler_params=pltpu.CompilerParams(
                dimension_semantics=("parallel",),
                vmem_limit_bytes=vmem_limit,
            ),
        )(x2d, w_fold, b_fold)
    else:
        # -------------------- large-F N-axis (output-feature) tiling --------------------
        tn = n_tile if n_tile is not None else 512
        tn = max(128, (tn // 128) * 128)
        while ntiled_need(tm, tn) > budget and (tn > 128 or tm > 8):
            if tn > 128:
                tn = max(128, (tn // 2 // 128) * 128)
            else:
                tm = _round_down(tm // 2, 8)
        need = ntiled_need(tm, tn)
        vmem_limit = int(min(vmem_cap, max(32 << 20, need + (8 << 20))))
        out2d = pl.pallas_call(
            functools.partial(_gcn_kernel_ntiled, **kernel_kwargs),
            out_shape=jax.ShapeDtypeStruct((M, F), x.dtype),
            grid_spec=pltpu.PrefetchScalarGridSpec(
                num_scalar_prefetch=0,
                grid=(pl.cdiv(M, tm), pl.cdiv(F, tn)),
                in_specs=[
                    pl.BlockSpec((tm, F), lambda i, j: (i, 0)),   # full-K row tile (reused over j)
                    pl.BlockSpec((tm, tn), lambda i, j: (i, j)),  # residual columns
                    pl.BlockSpec((F, tn), lambda i, j: (0, j)),   # W' column panel
                    pl.BlockSpec((1, tn), lambda i, j: (0, j)),   # b' column panel
                ],
                out_specs=pl.BlockSpec((tm, tn), lambda i, j: (i, j)),
            ),
            compiler_params=pltpu.CompilerParams(
                dimension_semantics=("parallel", "arbitrary"),
                vmem_limit_bytes=vmem_limit,
            ),
        )(x2d, x2d, w_fold, b_fold)

    return out2d.reshape(B, S, F)


# ---------------------------------------------------------------------------
# Self-test
# ---------------------------------------------------------------------------
def _reference(x, w, b, adj, act):
    h = (x @ w + b) @ adj
    return _apply_act(x + h, act)


if __name__ == "__main__":
    key = jax.random.PRNGKey(0)
    kx, kw, kb, ka, kx2, kx3 = jax.random.split(key, 6)

    def make_params(k1, k2, F):
        std = jnp.sqrt(2.0 / (F + F))   # xavier_normal_ for a square W
        w = jax.random.normal(k1, (F, F), dtype=jnp.float32) * std
        b = jax.random.normal(k2, (F,), dtype=jnp.float32) * 0.1  # nonzero to exercise bias
        return w, b

    # 1) Small-F resident-W' path (B=2, S=8, F=32), no HBM padding anywhere.
    B, S, F = 2, 8, 32
    w, b = make_params(kw, kb, F)
    adj = jax.random.normal(ka, (F, F), dtype=jnp.float32)
    x = jax.random.normal(kx, (B, S, F), dtype=jnp.float32)
    for act in ("none", "tanh"):
        out = jax.block_until_ready(graph_convolution_layer(x, w, b, adj, act=act))
        ref = _reference(x, w, b, adj, act)
        assert out.shape == ref.shape and out.dtype == ref.dtype
        assert jnp.allclose(out, ref, atol=2e-3, rtol=2e-3), f"mismatch ({act})"

    # 2) M not divisible by the row tile -> masked boundary tile (B=2, S=5).
    x_b = jax.random.normal(kx2, (2, 5, F), dtype=jnp.float32)
    out = jax.block_until_ready(graph_convolution_layer(x_b, w, b, adj, act="relu"))
    ref = _reference(x_b, w, b, adj, "relu")
    assert jnp.allclose(out, ref, atol=2e-3, rtol=2e-3), "mismatch (boundary tile)"

    # 3) Forced large-F fallback: N-axis tiling with tn=128 at F=256.
    F2 = 256
    kw2, kb2, ka2 = jax.random.split(kw, 3)
    w2, b2 = make_params(kw2, kb2, F2)
    adj2 = jax.random.normal(ka2, (F2, F2), dtype=jnp.float32)
    x2 = jax.random.normal(kx3, (2, 8, F2), dtype=jnp.float32)
    out = jax.block_until_ready(
        graph_convolution_layer(x2, w2, b2, adj2, act="tanh", n_tile=128))
    ref = _reference(x2, w2, b2, adj2, "tanh")
    assert jnp.allclose(out, ref, atol=5e-3, rtol=5e-3), "mismatch (n-tiled)"

    print("KERNEL_OK")
</pallas_src>

<mosaic_0001>
module attributes {stable_mosaic.version = 11 : i64} {
  func.func @_gcn_kernel_resident(%arg0: i32, %arg1: memref<8x32xf32, #tpu.memory_space<vmem>>, %arg2: memref<32x32xf32, #tpu.memory_space<vmem>>, %arg3: memref<1x32xf32, #tpu.memory_space<vmem>>, %arg4: memref<8x32xf32, #tpu.memory_space<vmem>>) attributes {dimension_semantics = [#tpu.dimension_semantics<parallel>], iteration_bounds = array<i64: 2>, scalar_prefetch = 0 : i64, scratch_operands = 0 : i64, tpu.core_type = #tpu.core_type<tc>, window_params = [{transform_indices = @transform_0, window_bounds = array<i64: 8, 32>}, {pipeline_mode = #tpu.pipeline_mode<synchronous>, transform_indices = @transform_1, window_bounds = array<i64: 32, 32>}, {pipeline_mode = #tpu.pipeline_mode<synchronous>, transform_indices = @transform_2, window_bounds = array<i64: 1, 32>}, {transform_indices = @transform_3, window_bounds = array<i64: 8, 32>}]} {
    %c0 = arith.constant 0 : index
    %c0_0 = arith.constant 0 : index
    %0 = vector.load %arg1[%c0, %c0_0] : memref<8x32xf32, #tpu.memory_space<vmem>>, vector<8x32xf32>
    %c0_1 = arith.constant 0 : index
    %c0_2 = arith.constant 0 : index
    %1 = vector.load %arg2[%c0_1, %c0_2] : memref<32x32xf32, #tpu.memory_space<vmem>>, vector<32x32xf32>
    %cst = arith.constant dense<0.000000e+00> : vector<8x32xf32>
    %2 = tpu.matmul %0, %1, %cst {dimension_numbers = #tpu.dot_dimension_numbers<[1], [0], [0], [1], [0, 0, 1, 1], [], []>} : vector<8x32xf32>, vector<32x32xf32>, vector<8x32xf32> -> vector<8x32xf32>
    %3 = arith.addf %0, %2 : vector<8x32xf32>
    %c0_3 = arith.constant 0 : index
    %c0_4 = arith.constant 0 : index
    %4 = vector.load %arg3[%c0_3, %c0_4] : memref<1x32xf32, #tpu.memory_space<vmem>>, vector<1x32xf32>
    %5 = vector.broadcast %4 : vector<1x32xf32> to vector<8x32xf32>
    %6 = arith.addf %3, %5 : vector<8x32xf32>
    %c0_5 = arith.constant 0 : index
    %c0_6 = arith.constant 0 : index
    %7 = vector.load %arg4[%c0_5, %c0_6] : memref<8x32xf32, #tpu.memory_space<vmem>>, vector<8x32xf32>
    tpu.vector_store %arg4[%c0_5, %c0_6], %6 {strides = array<i32>} : memref<8x32xf32, #tpu.memory_space<vmem>>, vector<8x32xf32>,
    return
  }
  func.func @transform_0(%arg0: i32) -> (i32, i32) {
    %c0_i32 = arith.constant 0 : i32
    %c0_i32_0 = arith.constant 0 : i32
    return %arg0, %c0_i32 : i32, i32
  }
  func.func @transform_1(%arg0: i32) -> (i32, i32) {
    %c0_i32 = arith.constant 0 : i32
    %c0_i32_0 = arith.constant 0 : i32
    %c0_i32_1 = arith.constant 0 : i32
    return %c0_i32, %c0_i32_0 : i32, i32
  }
  func.func @transform_2(%arg0: i32) -> (i32, i32) {
    %c0_i32 = arith.constant 0 : i32
    %c0_i32_0 = arith.constant 0 : i32
    %c0_i32_1 = arith.constant 0 : i32
    return %c0_i32, %c0_i32_0 : i32, i32
  }
  func.func @transform_3(%arg0: i32) -> (i32, i32) {
    %c0_i32 = arith.constant 0 : i32
    %c0_i32_0 = arith.constant 0 : i32
    return %arg0, %c0_i32 : i32, i32
  }
}

</mosaic_0001>

<llo_original>
// kernel: tpu_custom_call.1
$region0: #{tpu_custom_call.1}
  #allocation0 [shape = 'u32[]', space=smem, size = 0x4, offset = 0x4, fixed_abs, tag = 'smem constant byte address 0x4 - core index']
  #allocation1 [shape = 'u32[72,128]{1,0:T(1,128)}', space=vmem, size = 0x9000, scoped, tag = 'internal scratch']
  %s0 = inlined_call_operand.hbm [shape: f32[16,32], index: 0, kind: input, shape index: {}]
  %s1 = inlined_call_operand.hbm [shape: f32[32,32], index: 1, kind: input, shape index: {}]
  %s2 = inlined_call_operand.vmem [shape: f32[1,32], index: 2, kind: input, shape index: {}]
  %s3 = inlined_call_operand.hbm [shape: f32[16,32], index: 3, kind: output, shape index: {}]
  %s4 = sld [smem:[#allocation0]]
  $region53: #{tpu_custom_call.1} parent=0
    _
  %s6 = ssub.s32 1, %s4
  %s7 = scalar_select 0, %s6, %s4
  $region1: #{tpu_custom_call.1} parent=0
    #allocation2 [shape = 'u8[8192]{0}', space=vmem, size = 0x2000, scoped, tag = 'input window, operand 0']
    #allocation3 [shape = 's32[2]{0}', space=sflag, size = 0x8, scoped, tag = 'scoped memory for tpu_custom_call.1']
    #allocation4 [shape = 's32[2]{0}', space=sflag, size = 0x8, scoped, tag = 'scoped memory for tpu_custom_call.1']
    #allocation5 [shape = 'u8[16384]{0}', space=vmem, size = 0x4000, scoped, tag = 'input window, operand 1, single buffered']
    #allocation6 [shape = 's32[1]{0}', space=sflag, size = 0x4, scoped, tag = 'scoped memory for tpu_custom_call.1']
    #allocation7 [shape = 'u8[8192]{0}', space=vmem, size = 0x2000, scoped, tag = 'output window, operand 0']
    %8 = vsyncpa [#allocation3], 0
    %s9 = scalar_lea.sflag [#allocation3], 1
    %10 = vsyncpa %s9, 0
    %11 = vsyncpa [#allocation6], 0
    %12 = vsyncpa [#allocation4], 0
    %s13 = scalar_lea.sflag [#allocation4], 1
    %14 = vsyncpa %s13, 0
    loop: start=0, step=1, limit=4
    $region2: #{tpu_custom_call.1} parent=1 // loop_pre_header
      _
    $region3: #{tpu_custom_call.1} parent=1 // loop_header
      %s16 = sphi 0, %s20
      %p17 = scmp.ge.s32.totalorder %s16, 4
      %s26 = sphi 0, %s28
      %s29 = sphi 0, %s26
      %s30 = sphi 0, %s29
      %s46 = sphi 0, %s30
      %s50 = sphi 0, %s50
      %s52 = sphi 0, %s50
      %s53 = sphi 0, %s52
      %s67 = sphi 0, %s53
      %s71 = sphi 0, %s71
      %s73 = sphi 0, %s71
      %s74 = sphi 0, %s73
      %s88 = sphi 0, %s74
      %s94 = sphi 0, %s96
      %s97 = sphi 0, %s94
      %s98 = sphi 0, %s97
      %s114 = sphi 0, %s98
    $region4: #{tpu_custom_call.1} parent=1 // loop_header_branch
      %19 = sbr.rel (%p17) target = $region8
    $region5: #{tpu_custom_call.1} parent=1 // loop_body
      %s21 = ssub.s32 %s16, 1
      %s22 = ssub.s32 %s16, 2
      %s23 = sadd.s32 %s16, 1
      %s24 = ssub.s32 %s16, %s23
      %p25 = scmp.eq.s32.totalorder %s24, 0
      %s27 = sadd.s32 %s26, 1
      %s28 = scalar_select %p25, %s26, %s27
      %p31 = pneg %p25
      %p32 = scmp.eq.s32.totalorder %s16, 1
      %p33 = por %p31, %p32
      %p34 = scmp.ne.s32.totalorder %s26, %s29
      %p35 = scmp.eq.s32.totalorder %s16, 0
      %p36 = por %p34, %p35
      %p37 = scmp.ne.s32.totalorder %s26, %s29
      %p38 = scmp.eq.s32.totalorder %s21, 1
      %p39 = por %p37, %p38
      %p40 = scmp.ne.s32.totalorder %s29, %s30
      %p41 = scmp.eq.s32.totalorder %s21, 0
      %p42 = por %p40, %p41
      %p43 = scmp.ne.s32.totalorder %s29, %s30
      %p44 = scmp.eq.s32.totalorder %s22, 1
      %p45 = por %p43, %p44
      %p47 = scmp.ne.s32.totalorder %s30, %s46
      %p48 = scmp.eq.s32.totalorder %s22, 0
      %p49 = por %p47, %p48
      %s51 = sadd.s32 %s50, 1
      %p54 = scmp.eq.s32.totalorder %s16, 1
      %p55 = scmp.ne.s32.totalorder %s50, %s52
      %p56 = scmp.eq.s32.totalorder %s16, 0
      %p57 = por %p55, %p56
      %p58 = scmp.ne.s32.totalorder %s50, %s52
      %p59 = scmp.eq.s32.totalorder %s21, 1
      %p60 = por %p58, %p59
      %p61 = scmp.ne.s32.totalorder %s52, %s53
      %p62 = scmp.eq.s32.totalorder %s21, 0
      %p63 = por %p61, %p62
      %p64 = scmp.ne.s32.totalorder %s52, %s53
      %p65 = scmp.eq.s32.totalorder %s22, 1
      %p66 = por %p64, %p65
      %p68 = scmp.ne.s32.totalorder %s53, %s67
      %p69 = scmp.eq.s32.totalorder %s22, 0
      %p70 = por %p68, %p69
      %s72 = sadd.s32 %s71, 1
      %p75 = scmp.eq.s32.totalorder %s16, 1
      %p76 = scmp.ne.s32.totalorder %s71, %s73
      %p77 = scmp.eq.s32.totalorder %s16, 0
      %p78 = por %p76, %p77
      %p79 = scmp.ne.s32.totalorder %s71, %s73
      %p80 = scmp.eq.s32.totalorder %s21, 1
      %p81 = por %p79, %p80
      %p82 = scmp.ne.s32.totalorder %s73, %s74
      %p83 = scmp.eq.s32.totalorder %s21, 0
      %p84 = por %p82, %p83
      %p85 = scmp.ne.s32.totalorder %s73, %s74
      %p86 = scmp.eq.s32.totalorder %s22, 1
      %p87 = por %p85, %p86
      %p89 = scmp.ne.s32.totalorder %s74, %s88
      %p90 = scmp.eq.s32.totalorder %s22, 0
      %p91 = por %p89, %p90
      %s92 = ssub.s32 %s16, %s23
      %p93 = scmp.eq.s32.totalorder %s92, 0
      %s95 = sadd.s32 %s94, 1
      %s96 = scalar_select %p93, %s94, %s95
      %p99 = pneg %p93
      %p100 = scmp.eq.s32.totalorder %s16, 1
      %p101 = por %p99, %p100
      %p102 = scmp.ne.s32.totalorder %s94, %s97
      %p103 = scmp.eq.s32.totalorder %s16, 0
      %p104 = por %p102, %p103
      %p105 = scmp.ne.s32.totalorder %s94, %s97
      %p106 = scmp.eq.s32.totalorder %s21, 1
      %p107 = por %p105, %p106
      %p108 = scmp.ne.s32.totalorder %s97, %s98
      %p109 = scmp.eq.s32.totalorder %s21, 0
      %p110 = por %p108, %p109
      %p111 = scmp.ne.s32.totalorder %s97, %s98
      %p112 = scmp.eq.s32.totalorder %s22, 1
      %p113 = por %p111, %p112
      %p115 = scmp.ne.s32.totalorder %s98, %s114
      %p116 = scmp.eq.s32.totalorder %s22, 0
      %p117 = por %p115, %p116
      %p118 = scmp.le.s32.totalorder 1, %s16
      %p119 = scmp.lt.s32.totalorder %s16, 3
      %p120 = pnand %p118, %p119
      %p121 = pneg %p120
      // Predicated region
      $region9: #{tpu_custom_call.1} parent=5 // pred_check
        _
      $region10: #{tpu_custom_call.1} parent=5 // pred_check_branch
        %123 = sbr.rel (%p120) target = $region12
      $region11: #{tpu_custom_call.1} parent=5 // pred_region
        %s124 = ssub.s32 %s16, 1
        // Predicated region
        $region13: #{tpu_custom_call.1} parent=11 // pred_check
          %p125 = pneg %p63
        $region14: #{tpu_custom_call.1} parent=11 // pred_check_branch
          %127 = sbr.rel (%p125) target = $region16
        $region15: #{tpu_custom_call.1} parent=11 // pred_region
          %129 = vsyncadd [#allocation6], 0
          %s130 = sshll.u32 %s1, 4
          %s131 = int_to_ptr.hbm [resolvable:$true] %s130
          %s132 = sshll.u32 [#allocation5], 4
          %s133 = int_to_ptr.vmem [resolvable:$true] %s132
          %138 = dma.hbm_to_vmem [thread:$0]  %s131, 512, %s133, [#allocation6], 128, 128, 8
        $region16: #{tpu_custom_call.1} parent=11 // pred_fallthru
          _
        // Predicated region
        $region17: #{tpu_custom_call.1} parent=11 // pred_check
          %p139 = pneg %p84
        $region18: #{tpu_custom_call.1} parent=11 // pred_check_branch
          %141 = sbr.rel (%p139) target = $region20
        $region19: #{tpu_custom_call.1} parent=11 // pred_region
          _
        $region20: #{tpu_custom_call.1} parent=11 // pred_fallthru
          _
      $region12: #{tpu_custom_call.1} parent=5 // pred_fallthru
        _
      %p142 = scmp.lt.s32.totalorder %s16, 2
      // Predicated region
      $region21: #{tpu_custom_call.1} parent=5 // pred_check
        %p143 = pneg %p142
      $region22: #{tpu_custom_call.1} parent=5 // pred_check_branch
        %145 = sbr.rel (%p143) target = $region24
      $region23: #{tpu_custom_call.1} parent=5 // pred_region
        // Predicated region
        $region25: #{tpu_custom_call.1} parent=23 // pred_check
          %p146 = pneg %p36
        $region26: #{tpu_custom_call.1} parent=23 // pred_check_branch
          %148 = sbr.rel (%p146) target = $region28
        $region27: #{tpu_custom_call.1} parent=23 // pred_region
          %s149 = sand.u32 %s26, 1
          %s150 = scalar_lea.sflag [#allocation3], %s149
          %s151 = sand.u32 %s26, 1
          %s152 = smul.addr %s151, 8
          %s153 = scalar_lea.vmem [#allocation2], %s152
          %155 = vsyncadd %s150, 0
          %s156 = smul.addr %s16, 8
          %s157 = scalar_lea.hbm %s0, %s156
          %s159 = sshll.u32 %s157, 4
          %s160 = int_to_ptr.hbm [resolvable:$true] %s159
          %s161 = sshll.u32 %s153, 4
          %s162 = int_to_ptr.vmem [resolvable:$true] %s161
          %164 = dma.hbm_to_vmem [thread:$0]  %s160, 128, %s162, %s150
        $region28: #{tpu_custom_call.1} parent=23 // pred_fallthru
          _
      $region24: #{tpu_custom_call.1} parent=5 // pred_fallthru
        _
      %p165 = scmp.le.s32.totalorder 1, %s16
      %p166 = scmp.lt.s32.totalorder %s16, 3
      %p167 = pnand %p165, %p166
      %p168 = pneg %p167
      // Predicated region
      $region29: #{tpu_custom_call.1} parent=5 // pred_check
        _
      $region30: #{tpu_custom_call.1} parent=5 // pred_check_branch
        %170 = sbr.rel (%p167) target = $region32
      $region31: #{tpu_custom_call.1} parent=5 // pred_region
        %s171 = ssub.s32 %s16, 1
        %s172 = sand.u32 %s29, 1
        %s173 = scalar_lea.sflag [#allocation3], %s172
        %s174 = sand.u32 %s29, 1
        %s175 = smul.addr %s174, 8
        %s176 = scalar_lea.vmem [#allocation2], %s175
        // Predicated region
        $region33: #{tpu_custom_call.1} parent=31 // pred_check
          %p177 = pneg %p42
        $region34: #{tpu_custom_call.1} parent=31 // pred_check_branch
          %179 = sbr.rel (%p177) target = $region36
        $region35: #{tpu_custom_call.1} parent=31 // pred_region
          %181 = dma.done %s173, 128
        $region36: #{tpu_custom_call.1} parent=31 // pred_fallthru
          _
        // Predicated region
        $region37: #{tpu_custom_call.1} parent=31 // pred_check
          %p182 = pneg %p63
        $region38: #{tpu_custom_call.1} parent=31 // pred_check_branch
          %184 = sbr.rel (%p182) target = $region40
        $region39: #{tpu_custom_call.1} parent=31 // pred_region
          %186 = dma.done [#allocation6], 512
        $region40: #{tpu_custom_call.1} parent=31 // pred_fallthru
          _
        %s187 = sand.u32 %s29, 1
        %s188 = scalar_lea.sflag [#allocation3], %s187
        %s189 = sand.u32 %s29, 1
        %s190 = smul.addr %s189, 8
        %s191 = scalar_lea.vmem [#allocation2], %s190
        %p192 = pneg %p42
        %p193 = pneg %p39
        %p194 = pneg %p63
        %p195 = pneg %p60
        %p196 = pneg %p84
        %p197 = pneg %p81
        %p198 = pneg %p110
        %p199 = pneg %p107
        %s200 = sand.u32 %s97, 1
        %s201 = scalar_lea.sflag [#allocation4], %s200
        %s202 = sand.u32 %s97, 1
        %s203 = smul.addr %s202, 8
        %s204 = scalar_lea.vmem [#allocation7], %s203
        %v205 = vld [vmem:[%s176] sm:$0xff]
        %v206 = vld [vmem:[#allocation5] sm:$0xff]
        %v207 = vld [vmem:[#allocation5 + $0x8] sm:$0xff]
        %v208 = vld [vmem:[#allocation5 + $0x10] sm:$0xff]
        %v209 = vld [vmem:[#allocation5 + $0x18] sm:$0xff]
        %vm210 = vcmask 261120
        %v212 = vsel %vm210, %v205, 0
        %214 = vmatpush.msra.mxu0 0.0
        %215 = vmatpush.msra.mxu0 0.0
        %216 = vmatpush.msra.mxu0 0.0
        %217 = vmatpush.msra.mxu0 0.0
        %218 = vmatpush.msra.mxu0 0.0
        %219 = vmatpush.msra.mxu0 0.0
        %220 = vmatpush.msra.mxu0 0.0
        %221 = vmatpush.msra.mxu0 0.0
        %222 = vmatpush.msra.mxu0 0.0
        %223 = vmatpush.msra.mxu0 0.0
        %224 = vmatpush.msra.mxu0 0.0
        %225 = vmatpush.msra.mxu0 0.0
        %226 = vmatpush.msra.mxu0 %v209
        %227 = vmatpush.msra.mxu0 %v208
        %228 = vmatpush.msra.mxu0 %v207
        %229 = vmatpush.msra.mxu0 %v206
        %230 = vmatmul.f32.gmra.mxu0 %v212
        %v231 = vpop.f32.mrf.mxu0
        %v232 = vadd.f32 0.0, %v231
        %233 = vdwg.mxu0
        %v234 = vadd.f32 %v205, %v232
        %v235 = vld [vmem:[%s2] sm:$0x1]
        %v237 = vperm.slane %v235, 0
        %v239 = vadd.f32 %v234, %v237
        %240 = vst.msk [vmem:[%s204] sm:$0xff] %vm210, %v239
        %s241 = sand.u32 %s97, 1
        %s242 = scalar_lea.sflag [#allocation4], %s241
        %s243 = sand.u32 %s97, 1
        %s244 = smul.addr %s243, 8
        %s245 = scalar_lea.vmem [#allocation7], %s244
        // Predicated region
        $region41: #{tpu_custom_call.1} parent=31 // pred_check
          %p246 = pneg %p107
        $region42: #{tpu_custom_call.1} parent=31 // pred_check_branch
          %248 = sbr.rel (%p246) target = $region44
        $region43: #{tpu_custom_call.1} parent=31 // pred_region
          %250 = vsyncadd %s242, 0
          %s251 = smul.addr %s21, 8
          %s252 = scalar_lea.hbm %s3, %s251
          %s254 = sshll.u32 %s245, 4
          %s255 = int_to_ptr.vmem [resolvable:$true] %s254
          %s256 = sshll.u32 %s252, 4
          %s257 = int_to_ptr.hbm [resolvable:$true] %s256
          %259 = dma.vmem_to_hbm [thread:$0]  %s255, 128, %s257, %s242
        $region44: #{tpu_custom_call.1} parent=31 // pred_fallthru
          _
      $region32: #{tpu_custom_call.1} parent=5 // pred_fallthru
        _
      %p260 = scmp.le.s32.totalorder 2, %s16
      // Predicated region
      $region45: #{tpu_custom_call.1} parent=5 // pred_check
        %p261 = pneg %p260
      $region46: #{tpu_custom_call.1} parent=5 // pred_check_branch
        %263 = sbr.rel (%p261) target = $region48
      $region47: #{tpu_custom_call.1} parent=5 // pred_region
        %s264 = ssub.s32 %s16, 2
        // Predicated region
        $region49: #{tpu_custom_call.1} parent=47 // pred_check
          %p265 = pneg %p113
        $region50: #{tpu_custom_call.1} parent=47 // pred_check_branch
          %267 = sbr.rel (%p265) target = $region52
        $region51: #{tpu_custom_call.1} parent=47 // pred_region
          %s268 = sand.u32 %s98, 1
          %s269 = scalar_lea.sflag [#allocation4], %s268
          %s270 = sand.u32 %s98, 1
          %s271 = smul.addr %s270, 8
          %s272 = scalar_lea.vmem [#allocation7], %s271
          %274 = dma.done %s269, 128
        $region52: #{tpu_custom_call.1} parent=47 // pred_fallthru
          _
      $region48: #{tpu_custom_call.1} parent=5 // pred_fallthru
        _
    $region6: #{tpu_custom_call.1} parent=1 // loop_footer
      %s20 = sadd.s32 1, %s16
    $region7: #{tpu_custom_call.1} parent=1 // loop_footer_branch
      %15 = sbr.rel target = $region3
    $region8: #{tpu_custom_call.1} parent=1 // loop_exit
      _
    %275 = vsyncpa [#allocation3], 1
    %s276 = scalar_lea.sflag [#allocation3], 1
    %277 = vsyncpa %s276, 1
    %278 = vsyncpa [#allocation6], 1
    %279 = vsyncpa [#allocation4], 1
    %s280 = scalar_lea.sflag [#allocation4], 1
    %281 = vsyncpa %s280, 1

</llo_original>
